<compile_context>
chip_gen: v6e
topology: v6e:2x2x1
jax: 0.10.0
libtpu: 0.0.40
codegen_flags: <defaults>
</compile_context>

<pallas_src>
import math
import jax
import jax.numpy as jnp
from jax.experimental import pallas as pl
from jax.experimental.pallas import tpu as pltpu


def _round_up(v, m):
    return (v + m - 1) // m * m


def _largest_aligned_divisor(total, cap, align=128):
    """Largest multiple-of-`align` divisor of `total` (an `align`-multiple) <= cap."""
    t = max(align, min((cap // align) * align, total))
    while t > align and total % t != 0:
        t -= align
    return t


def _emb_head(s_ref, f_ref, wec_ref, wes_ref, b_ref):
    # Scalar embedding fused with its (tiny) matmul:
    #   emb @ We == cos(phase) @ We[:E/2] + sin(phase) @ We[E/2:]   (concat elided)
    phase = s_ref[...] * f_ref[...]                       # (B, E/2) f32 outer product
    y = jnp.dot(jnp.cos(phase), wec_ref[...], preferred_element_type=jnp.float32)
    y = y + jnp.dot(jnp.sin(phase), wes_ref[...], preferred_element_type=jnp.float32)
    return y + b_ref[...]


def _kernel_single_k(s_ref, f_ref, x_ref, wx_ref, wec_ref, wes_ref, b_ref, out_ref):
    # Whole reduction dim resident (nk == 1): branch-free, no accumulator bookkeeping.
    out_ref[...] = _emb_head(s_ref, f_ref, wec_ref, wes_ref, b_ref) + jnp.dot(
        x_ref[...], wx_ref[...], preferred_element_type=jnp.float32)


def _kernel_k_tiled(s_ref, f_ref, x_ref, wx_ref, wec_ref, wes_ref, b_ref, out_ref):
    # Grid: (j over output columns, k over reduction dim D); k inner ("arbitrary").
    # out_ref's block index is constant in k -> it stays VMEM-resident across the
    # reduction and (being f32) doubles as the accumulator.
    k = pl.program_id(1)

    @pl.when(k == 0)
    def _init():
        out_ref[...] = _emb_head(s_ref, f_ref, wec_ref, wes_ref, b_ref)

    out_ref[...] += jnp.dot(x_ref[...], wx_ref[...], preferred_element_type=jnp.float32)


def network_scalar_embedding_forward(x, s, freqs, wx, we, b):
    """out = model(flatten(x), embed(s)); embedding + linear model fused in one kernel."""
    B = x.shape[0]
    D = int(x.size // B)
    E = 2 * freqs.shape[0]
    O = wx.shape[1]

    # ---- plain-JAX glue -----------------------------------------------------
    x_flat = x.reshape(B, D).astype(jnp.bfloat16)          # NCHW row-major flatten
    wx_b = wx.astype(jnp.bfloat16)
    we_f = we.astype(jnp.float32)
    we_c = we_f[: E // 2]                                   # cos half of We  (E/2, O)
    we_s = we_f[E // 2:]                                    # sin half of We  (E/2, O)
    s2 = s.reshape(B, 1).astype(jnp.float32)
    f2 = freqs.reshape(1, E // 2).astype(jnp.float32)
    b2 = b.reshape(1, O).astype(jnp.float32)

    # Zero-pad D / O to lane multiples (zeros don't change the math; result is
    # sliced back).  Avoids full-extent-block fallbacks and masked narrow vst.
    D_pad, O_pad = _round_up(D, 128), _round_up(O, 128)
    if D_pad != D:
        x_flat = jnp.pad(x_flat, ((0, 0), (0, D_pad - D)))
        wx_b = jnp.pad(wx_b, ((0, D_pad - D), (0, 0)))
    if O_pad != O:
        wx_b = jnp.pad(wx_b, ((0, 0), (0, O_pad - O)))
        we_c = jnp.pad(we_c, ((0, 0), (0, O_pad - O)))
        we_s = jnp.pad(we_s, ((0, 0), (0, O_pad - O)))
        b2 = jnp.pad(b2, ((0, 0), (0, O_pad - O)))

    # Tile selection:
    #  * tn <= 512, and <= O_pad//2 when O allows, so the "parallel" j axis has
    #    >= 2 blocks (v7x megacore gets both TensorCores busy).
    #  * tk <= 2048: big enough to amortize per-step overhead, small enough that
    #    double-buffered bf16 Wx (<= ~4 MiB) fits every generation's default
    #    scoped VMEM (16 MiB v5e / 32 MiB v6e+v7x) — no vmem_limit_bytes needed.
    tn_cap = min(512, O_pad // 2) if O_pad >= 256 else O_pad
    tn = _largest_aligned_divisor(O_pad, tn_cap)
    tk = _largest_aligned_divisor(D_pad, 2048)
    nj, nk = O_pad // tn, D_pad // tk

    kernel = _kernel_single_k if nk == 1 else _kernel_k_tiled

    vmem = pltpu.MemorySpace.VMEM
    out = pl.pallas_call(
        kernel,
        out_shape=jax.ShapeDtypeStruct((B, O_pad), jnp.float32),
        grid_spec=pltpu.PrefetchScalarGridSpec(
            num_scalar_prefetch=0,
            grid=(nj, nk),
            in_specs=[
                pl.BlockSpec((B, 1),       lambda j, k: (0, 0), memory_space=vmem),  # s
                pl.BlockSpec((1, E // 2),  lambda j, k: (0, 0), memory_space=vmem),  # freqs
                # TODO(synk): x is re-streamed once per j tile; keep it fully
                # VMEM-resident or tile/parallelize B if batch ever grows large.
                pl.BlockSpec((B, tk),      lambda j, k: (0, k), memory_space=vmem),  # x (bf16)
                pl.BlockSpec((tk, tn),     lambda j, k: (k, j), memory_space=vmem),  # Wx (bf16)
                pl.BlockSpec((E // 2, tn), lambda j, k: (0, j), memory_space=vmem),  # We cos half
                pl.BlockSpec((E // 2, tn), lambda j, k: (0, j), memory_space=vmem),  # We sin half
                pl.BlockSpec((1, tn),      lambda j, k: (0, j), memory_space=vmem),  # bias
            ],
            out_specs=pl.BlockSpec((B, tn), lambda j, k: (0, j), memory_space=vmem),
        ),
        compiler_params=pltpu.CompilerParams(
            dimension_semantics=("parallel", "arbitrary")),
    )(s2, f2, x_flat, wx_b, we_c, we_s, b2)

    return out[:, :O] if O_pad != O else out


def make_positional_freqs(embedding_size, max_positions=10000, endpoint=True):
    # PositionalEmbedding(endpoint=True), as used by NetworkScalarEmbedding.
    half = embedding_size // 2
    k = jnp.arange(half, dtype=jnp.float32)
    k = k / (half - (1 if endpoint else 0))
    return (1.0 / max_positions) ** k                 # no 2*pi factor (matches torch code)


def make_fourier_freqs(embedding_size, key, scale=16.0):
    # FourierEmbedding: buffer = randn(E/2) * scale; forward uses 2*pi*freqs.
    half = embedding_size // 2
    base = jax.random.normal(key, (half,), dtype=jnp.float32) * scale
    return 2.0 * math.pi * base


def reference_forward(x, s, freqs, wx, we, b):
    # Pure-JAX reference mirroring the kernel's bf16 operand rounding for x/Wx
    # (f32 accumulation), so the comparison stays tight.
    B = x.shape[0]
    phase = s.astype(jnp.float32)[:, None] * freqs.astype(jnp.float32)[None, :]
    emb = jnp.concatenate([jnp.cos(phase), jnp.sin(phase)], axis=1)
    x_flat = x.reshape(B, -1).astype(jnp.bfloat16).astype(jnp.float32)
    wx_f = wx.astype(jnp.bfloat16).astype(jnp.float32)
    hi = jax.lax.Precision.HIGHEST
    out = (jnp.dot(x_flat, wx_f, precision=hi)
           + jnp.dot(emb, we.astype(jnp.float32), precision=hi)
           + b[None, :].astype(jnp.float32))
    return out


if __name__ == "__main__":
    key = jax.random.PRNGKey(0)
    k_x, k_s, k_f, k_wx, k_we, k_b = jax.random.split(key, 6)

    # Small shapes consistent with the module: NCHW input + scalar noise level.
    B, C, H, W = 2, 4, 16, 16
    E = 32             # embedding_size (even, as asserted in __init__)
    O = 128            # synthetic model output width (lane-friendly)
    D = C * H * W      # 1024 -> single K step (whole reduction resident)

    x = jax.random.normal(k_x, (B, C, H, W), dtype=jnp.float32)
    s = jax.random.uniform(k_s, (B,), dtype=jnp.float32)

    # Deterministic synthetic parameters (no checkpoint load).
    wx = jax.random.normal(k_wx, (D, O), dtype=jnp.float32) * 0.02
    we = jax.random.normal(k_we, (E, O), dtype=jnp.float32) * 0.02
    b = jax.random.normal(k_b, (O,), dtype=jnp.float32) * 0.01

    ok = True
    for name, freqs in (
        ("positional", make_positional_freqs(E, endpoint=True)),
        ("fourier", make_fourier_freqs(E, k_f, scale=16.0)),
    ):
        out = network_scalar_embedding_forward(x, s, freqs, wx, we, b)
        out = jax.block_until_ready(out)
        out_ref = reference_forward(x, s, freqs, wx, we, b)
        ok &= bool(jnp.allclose(out, out_ref, atol=5e-3, rtol=5e-3))

    if ok:
        print("KERNEL_OK")
    else:
        print("KERNEL_MISMATCH")
</pallas_src>

<mosaic_0001>
module attributes {stable_mosaic.version = 11 : i64} {
  func.func @_kernel_single_k(%arg0: i32, %arg1: i32, %arg2: memref<2x1xf32, #tpu.memory_space<vmem>>, %arg3: memref<1x16xf32, #tpu.memory_space<vmem>>, %arg4: memref<2x1024xbf16, #tpu.memory_space<vmem>>, %arg5: memref<1024x128xbf16, #tpu.memory_space<vmem>>, %arg6: memref<16x128xf32, #tpu.memory_space<vmem>>, %arg7: memref<16x128xf32, #tpu.memory_space<vmem>>, %arg8: memref<1x128xf32, #tpu.memory_space<vmem>>, %arg9: memref<2x128xf32, #tpu.memory_space<vmem>>) attributes {dimension_semantics = [#tpu.dimension_semantics<parallel>, #tpu.dimension_semantics<arbitrary>], iteration_bounds = array<i64: 1, 1>, scalar_prefetch = 0 : i64, scratch_operands = 0 : i64, tpu.core_type = #tpu.core_type<tc>, window_params = [{pipeline_mode = #tpu.pipeline_mode<synchronous>, transform_indices = @transform_0, window_bounds = array<i64: 2, 1>}, {pipeline_mode = #tpu.pipeline_mode<synchronous>, transform_indices = @transform_1, window_bounds = array<i64: 1, 16>}, {transform_indices = @transform_2, window_bounds = array<i64: 2, 1024>}, {transform_indices = @transform_3, window_bounds = array<i64: 1024, 128>}, {transform_indices = @transform_4, window_bounds = array<i64: 16, 128>}, {transform_indices = @transform_5, window_bounds = array<i64: 16, 128>}, {transform_indices = @transform_6, window_bounds = array<i64: 1, 128>}, {transform_indices = @transform_7, window_bounds = array<i64: 2, 128>}]} {
    %c0 = arith.constant 0 : index
    %c0_0 = arith.constant 0 : index
    %0 = vector.load %arg2[%c0, %c0_0] : memref<2x1xf32, #tpu.memory_space<vmem>>, vector<2x1xf32>
    %c0_1 = arith.constant 0 : index
    %c0_2 = arith.constant 0 : index
    %1 = vector.load %arg3[%c0_1, %c0_2] : memref<1x16xf32, #tpu.memory_space<vmem>>, vector<1x16xf32>
    %2 = vector.broadcast %0 : vector<2x1xf32> to vector<2x16xf32>
    %3 = vector.broadcast %1 : vector<1x16xf32> to vector<2x16xf32>
    %4 = arith.mulf %2, %3 : vector<2x16xf32>
    %5 = math.cos %4 : vector<2x16xf32>
    %c0_3 = arith.constant 0 : index
    %c0_4 = arith.constant 0 : index
    %6 = vector.load %arg6[%c0_3, %c0_4] : memref<16x128xf32, #tpu.memory_space<vmem>>, vector<16x128xf32>
    %cst = arith.constant dense<0.000000e+00> : vector<2x128xf32>
    %7 = tpu.matmul %5, %6, %cst {dimension_numbers = #tpu.dot_dimension_numbers<[1], [0], [0], [1], [0, 0, 1, 1], [], []>} : vector<2x16xf32>, vector<16x128xf32>, vector<2x128xf32> -> vector<2x128xf32>
    %8 = math.sin %4 : vector<2x16xf32>
    %c0_5 = arith.constant 0 : index
    %c0_6 = arith.constant 0 : index
    %9 = vector.load %arg7[%c0_5, %c0_6] : memref<16x128xf32, #tpu.memory_space<vmem>>, vector<16x128xf32>
    %cst_7 = arith.constant dense<0.000000e+00> : vector<2x128xf32>
    %10 = tpu.matmul %8, %9, %cst_7 {dimension_numbers = #tpu.dot_dimension_numbers<[1], [0], [0], [1], [0, 0, 1, 1], [], []>} : vector<2x16xf32>, vector<16x128xf32>, vector<2x128xf32> -> vector<2x128xf32>
    %11 = arith.addf %7, %10 : vector<2x128xf32>
    %c0_8 = arith.constant 0 : index
    %c0_9 = arith.constant 0 : index
    %12 = vector.load %arg8[%c0_8, %c0_9] : memref<1x128xf32, #tpu.memory_space<vmem>>, vector<1x128xf32>
    %13 = vector.broadcast %12 : vector<1x128xf32> to vector<2x128xf32>
    %14 = arith.addf %11, %13 : vector<2x128xf32>
    %c0_10 = arith.constant 0 : index
    %c0_11 = arith.constant 0 : index
    %15 = vector.load %arg4[%c0_10, %c0_11] : memref<2x1024xbf16, #tpu.memory_space<vmem>>, vector<2x1024xbf16>
    %c0_12 = arith.constant 0 : index
    %c0_13 = arith.constant 0 : index
    %16 = vector.load %arg5[%c0_12, %c0_13] : memref<1024x128xbf16, #tpu.memory_space<vmem>>, vector<1024x128xbf16>
    %cst_14 = arith.constant dense<0.000000e+00> : vector<2x128xf32>
    %17 = tpu.matmul %15, %16, %cst_14 {dimension_numbers = #tpu.dot_dimension_numbers<[1], [0], [0], [1], [0, 0, 1, 1], [], []>} : vector<2x1024xbf16>, vector<1024x128xbf16>, vector<2x128xf32> -> vector<2x128xf32>
    %18 = arith.addf %14, %17 : vector<2x128xf32>
    %c0_15 = arith.constant 0 : index
    %c0_16 = arith.constant 0 : index
    %19 = vector.load %arg9[%c0_15, %c0_16] : memref<2x128xf32, #tpu.memory_space<vmem>>, vector<2x128xf32>
    tpu.vector_store %arg9[%c0_15, %c0_16], %18 {strides = array<i32>} : memref<2x128xf32, #tpu.memory_space<vmem>>, vector<2x128xf32>,
    return
  }
  func.func @transform_0(%arg0: i32, %arg1: i32) -> (i32, i32) {
    %c0_i32 = arith.constant 0 : i32
    %c0_i32_0 = arith.constant 0 : i32
    %c0_i32_1 = arith.constant 0 : i32
    return %c0_i32, %c0_i32_0 : i32, i32
  }
  func.func @transform_1(%arg0: i32, %arg1: i32) -> (i32, i32) {
    %c0_i32 = arith.constant 0 : i32
    %c0_i32_0 = arith.constant 0 : i32
    %c0_i32_1 = arith.constant 0 : i32
    return %c0_i32, %c0_i32_0 : i32, i32
  }
  func.func @transform_2(%arg0: i32, %arg1: i32) -> (i32, i32) {
    %c0_i32 = arith.constant 0 : i32
    %c0_i32_0 = arith.constant 0 : i32
    return %c0_i32, %arg1 : i32, i32
  }
  func.func @transform_3(%arg0: i32, %arg1: i32) -> (i32, i32) {
    %c0_i32 = arith.constant 0 : i32
    return %arg1, %arg0 : i32, i32
  }
  func.func @transform_4(%arg0: i32, %arg1: i32) -> (i32, i32) {
    %c0_i32 = arith.constant 0 : i32
    %c0_i32_0 = arith.constant 0 : i32
    return %c0_i32, %arg0 : i32, i32
  }
  func.func @transform_5(%arg0: i32, %arg1: i32) -> (i32, i32) {
    %c0_i32 = arith.constant 0 : i32
    %c0_i32_0 = arith.constant 0 : i32
    return %c0_i32, %arg0 : i32, i32
  }
  func.func @transform_6(%arg0: i32, %arg1: i32) -> (i32, i32) {
    %c0_i32 = arith.constant 0 : i32
    %c0_i32_0 = arith.constant 0 : i32
    return %c0_i32, %arg0 : i32, i32
  }
  func.func @transform_7(%arg0: i32, %arg1: i32) -> (i32, i32) {
    %c0_i32 = arith.constant 0 : i32
    %c0_i32_0 = arith.constant 0 : i32
    return %c0_i32, %arg0 : i32, i32
  }
}

</mosaic_0001>

<llo_original>
// kernel: tpu_custom_call.1
$region0: #{tpu_custom_call.1}
  #allocation0 [shape = 'u32[]', space=smem, size = 0x4, offset = 0x4, fixed_abs, tag = 'smem constant byte address 0x4 - core index']
  #allocation1 [shape = 'u32[144,128]{1,0:T(1,128)}', space=vmem, size = 0x12000, scoped, tag = 'internal scratch']
  %s0 = inlined_call_operand.vmem [shape: f32[2,1], index: 0, kind: input, shape index: {}]
  %s1 = inlined_call_operand.vmem [shape: f32[1,16], index: 1, kind: input, shape index: {}]
  %s2 = inlined_call_operand.hbm [shape: bf16[2,1024], index: 2, kind: input, shape index: {}]
  %s3 = inlined_call_operand.hbm [shape: bf16[1024,128], index: 3, kind: input, shape index: {}]
  %s4 = inlined_call_operand.hbm [shape: f32[16,128], index: 4, kind: input, shape index: {}]
  %s5 = inlined_call_operand.hbm [shape: f32[16,128], index: 5, kind: input, shape index: {}]
  %s6 = inlined_call_operand.vmem [shape: f32[1,128], index: 6, kind: input, shape index: {}]
  %s7 = inlined_call_operand.hbm [shape: f32[2,128], index: 7, kind: output, shape index: {}]
  %s8 = sld [smem:[#allocation0]]
  $region54: #{tpu_custom_call.1} parent=0
    _
  %s10 = ssub.s32 1, %s8
  %s11 = scalar_select 0, %s10, %s8
  $region1: #{tpu_custom_call.1} parent=0
    #allocation2 [shape = 'u8[4096]{0}', space=vmem, size = 0x1000, scoped, tag = 'input window, operand 2, single buffered']
    #allocation3 [shape = 's32[1]{0}', space=sflag, size = 0x4, scoped, tag = 'scoped memory for tpu_custom_call.1']
    #allocation4 [shape = 's32[1]{0}', space=sflag, size = 0x4, scoped, tag = 'scoped memory for tpu_custom_call.1']
    #allocation5 [shape = 'u8[262144]{0}', space=vmem, size = 0x40000, scoped, tag = 'input window, operand 3, single buffered']
    #allocation6 [shape = 's32[1]{0}', space=sflag, size = 0x4, scoped, tag = 'scoped memory for tpu_custom_call.1']
    #allocation7 [shape = 'u8[8192]{0}', space=vmem, size = 0x2000, scoped, tag = 'input window, operand 4, single buffered']
    #allocation8 [shape = 'u8[8192]{0}', space=vmem, size = 0x2000, scoped, tag = 'input window, operand 5, single buffered']
    #allocation9 [shape = 's32[1]{0}', space=sflag, size = 0x4, scoped, tag = 'scoped memory for tpu_custom_call.1']
    #allocation10 [shape = 'u8[1024]{0}', space=vmem, size = 0x400, scoped, tag = 'output window, operand 0, single buffered']
    %12 = vsyncpa [#allocation3], 0
    %13 = vsyncpa [#allocation6], 0
    %14 = vsyncpa [#allocation9], 0
    %15 = vsyncpa [#allocation4], 0
    // Predicated region
    $region2: #{tpu_custom_call.1} parent=1 // pred_check
      _
    $region3: #{tpu_custom_call.1} parent=1 // pred_check_branch
      %17 = sbr.rel (0) target = $region5
    $region4: #{tpu_custom_call.1} parent=1 // pred_region
      _
    $region5: #{tpu_custom_call.1} parent=1 // pred_fallthru
      _
    // Predicated region
    $region6: #{tpu_custom_call.1} parent=1 // pred_check
      _
    $region7: #{tpu_custom_call.1} parent=1 // pred_check_branch
      %19 = sbr.rel (0) target = $region9
    $region8: #{tpu_custom_call.1} parent=1 // pred_region
      _
    $region9: #{tpu_custom_call.1} parent=1 // pred_fallthru
      _
    // Predicated region
    $region10: #{tpu_custom_call.1} parent=1 // pred_check
      _
    $region11: #{tpu_custom_call.1} parent=1 // pred_check_branch
      %21 = sbr.rel (0) target = $region13
    $region12: #{tpu_custom_call.1} parent=1 // pred_region
      %s23 = ssub.s32 128, 128
      %24 = vsyncadd [#allocation3], %s23
      %s26 = sshll.u32 [#allocation2], 4
      %s27 = int_to_ptr.vmem [resolvable:$true] %s26
      %29 = dma.hbm_to_vmem [thread:$0]  %s2, 128, %s27, [#allocation3]
    $region13: #{tpu_custom_call.1} parent=1 // pred_fallthru
      _
    // Predicated region
    $region14: #{tpu_custom_call.1} parent=1 // pred_check
      _
    $region15: #{tpu_custom_call.1} parent=1 // pred_check_branch
      %31 = sbr.rel (0) target = $region17
    $region16: #{tpu_custom_call.1} parent=1 // pred_region
      %s33 = ssub.s32 8192, 8192
      %34 = vsyncadd [#allocation6], %s33
      %s35 = sshll.u32 [#allocation5], 4
      %s36 = int_to_ptr.vmem [resolvable:$true] %s35
      %41 = dma.hbm_to_vmem [thread:$0]  %s3, 8192, %s36, [#allocation6], 64, 64, 4
    $region17: #{tpu_custom_call.1} parent=1 // pred_fallthru
      _
    // Predicated region
    $region18: #{tpu_custom_call.1} parent=1 // pred_check
      _
    $region19: #{tpu_custom_call.1} parent=1 // pred_check_branch
      %43 = sbr.rel (0) target = $region21
    $region20: #{tpu_custom_call.1} parent=1 // pred_region
      %s45 = ssub.s32 256, 256
      %46 = vsyncadd [#allocation6], %s45
      %s47 = sshll.u32 [#allocation7], 4
      %s48 = int_to_ptr.vmem [resolvable:$true] %s47
      %53 = dma.hbm_to_vmem [thread:$0]  %s4, 256, %s48, [#allocation6], 128, 128, 8
    $region21: #{tpu_custom_call.1} parent=1 // pred_fallthru
      _
    // Predicated region
    $region22: #{tpu_custom_call.1} parent=1 // pred_check
      _
    $region23: #{tpu_custom_call.1} parent=1 // pred_check_branch
      %55 = sbr.rel (0) target = $region25
    $region24: #{tpu_custom_call.1} parent=1 // pred_region
      %s57 = ssub.s32 256, 256
      %58 = vsyncadd [#allocation9], %s57
      %s59 = sshll.u32 [#allocation8], 4
      %s60 = int_to_ptr.vmem [resolvable:$true] %s59
      %65 = dma.hbm_to_vmem [thread:$0]  %s5, 256, %s60, [#allocation9], 128, 128, 8
    $region25: #{tpu_custom_call.1} parent=1 // pred_fallthru
      _
    // Predicated region
    $region26: #{tpu_custom_call.1} parent=1 // pred_check
      _
    $region27: #{tpu_custom_call.1} parent=1 // pred_check_branch
      %67 = sbr.rel (0) target = $region29
    $region28: #{tpu_custom_call.1} parent=1 // pred_region
      _
    $region29: #{tpu_custom_call.1} parent=1 // pred_fallthru
      _
    // Predicated region
    $region30: #{tpu_custom_call.1} parent=1 // pred_check
      _
    $region31: #{tpu_custom_call.1} parent=1 // pred_check_branch
      %69 = sbr.rel (0) target = $region33
    $region32: #{tpu_custom_call.1} parent=1 // pred_region
      %70 = dma.done [#allocation3], 128
    $region33: #{tpu_custom_call.1} parent=1 // pred_fallthru
      _
    // Predicated region
    $region34: #{tpu_custom_call.1} parent=1 // pred_check
      _
    $region35: #{tpu_custom_call.1} parent=1 // pred_check_branch
      %72 = sbr.rel (0) target = $region37
    $region36: #{tpu_custom_call.1} parent=1 // pred_region
      %73 = dma.done [#allocation6], 8192
    $region37: #{tpu_custom_call.1} parent=1 // pred_fallthru
      _
    // Predicated region
    $region38: #{tpu_custom_call.1} parent=1 // pred_check
      _
    $region39: #{tpu_custom_call.1} parent=1 // pred_check_branch
      %75 = sbr.rel (0) target = $region41
    $region40: #{tpu_custom_call.1} parent=1 // pred_region
      %76 = dma.done [#allocation6], 256
    $region41: #{tpu_custom_call.1} parent=1 // pred_fallthru
      _
    // Predicated region
    $region42: #{tpu_custom_call.1} parent=1 // pred_check
      _
    $region43: #{tpu_custom_call.1} parent=1 // pred_check_branch
      %78 = sbr.rel (0) target = $region45
    $region44: #{tpu_custom_call.1} parent=1 // pred_region
      %79 = dma.done [#allocation9], 256
    $region45: #{tpu_custom_call.1} parent=1 // pred_fallthru
      _
    %v81 = vld [vmem:[%s0] sm:$0x3]
    %v82 = vld [vmem:[%s1] sm:$0x1]
    %84 = vset.pattern.permute.xlu0 0
    %85 = vperm.xlu0 %84, %v81
    %v86 = vpop.permute.xlu0 %85
    %v89 = vlaneseq
    %v90 = vshrl.u32 %v89, 7
    %v91 = vsub.s32 0, %v90
    %v92 = vrot.slane %v82, %v91
    %v94 = vmul.f32 %v86, %v92
    %v95 = vand.u32 2147483647, %v94
    %vm96 = vcmp.le.f32.partialorder %v95, 0.7853982
    %vm97 = vcmp.lt.s32.totalorder %v94, 0
    %v98 = vand.u32 %v94, 2139095040
    %v99 = vshrl.u32 %v98, 23
    %v100 = vsub.s32 %v99, 127
    %v101 = vand.u32 2147483647, %v94
    %v102 = vand.u32 %v101, 8388607
    %v103 = vor.u32 %v102, 8388608
    %v104 = vsub.s32 0, %v103
    %v105 = vadd.s32 %v100, 1
    %vm106 = vcmp.gt.s32.totalorder %v105, 0
    %v107 = vsel %vm106, %v105, 0
    %v108 = vshrl.u32 %v107, 5
    %v109 = vand.u32 %v107, 31
    %v110 = vsub.s32 32, %v109
    %v111 = vshrl.u32 683565275, %v110
    %v112 = vshll.u32 683565275, %v109
    %v113 = vshrl.u32 2475754826, %v110
    %v114 = vor.u32 %v112, %v113
    %v115 = vshll.u32 2475754826, %v109
    %v116 = vshrl.u32 2131351028, %v110
    %v117 = vor.u32 %v115, %v116
    %v118 = vshll.u32 2131351028, %v109
    %v119 = vshrl.u32 2102212464, %v110
    %v120 = vor.u32 %v118, %v119
    %v121 = vshll.u32 2102212464, %v109
    %v122 = vshrl.u32 920167782, %v110
    %v123 = vor.u32 %v121, %v122
    %v124 = vshll.u32 920167782, %v109
    %v125 = vshrl.u32 1326507024, %v110
    %v126 = vor.u32 %v124, %v125
    %vm127 = vcmp.lt.s32.totalorder %v108, 1
    %vm128 = vcmp.lt.s32.totalorder %v108, 2
    %vm129 = vcmp.lt.s32.totalorder %v108, 3
    %vm130 = vcmp.lt.s32.totalorder %v108, 4
    %v131 = vsel %vm127, %v111, %v114
    %v132 = vsel %vm130, %v120, 2102212464
    %v133 = vsel %vm129, %v117, %v132
    %v134 = vsel %vm128, %v131, %v133
    %v135 = vsel %vm127, %v114, %v117
    %v136 = vsel %vm130, %v123, 920167782
    %v137 = vsel %vm129, %v120, %v136
    %v138 = vsel %vm128, %v135, %v137
    %v139 = vsel %vm127, %v117, %v120
    %v140 = vsel %vm130, %v126, 1326507024
    %v141 = vsel %vm129, %v123, %v140
    %v142 = vsel %vm128, %v139, %v141
    %v143 = vshll.u32 %v103, 8
    %v144 = vmul.u32.u64.compose %v143, %v142
    %v145 = vextract.low.u32 %v144
    %v146 = vextract.high.u32 %v144
    %v147 = vmul.u32.u64.compose %v143, %v138
    %v148 = vextract.low.u32 %v147
    %v149 = vextract.high.u32 %v147
    %v150 = vmul.u32 %v143, %v134
    %v151 = vadd.s32 %v146, %v148
    %vm152 = vc.u32 %v146, %v148
    %v153 = vadd.s32 %v149, 1
    %v154 = vsel %vm152, %v153, %v149
    %v155 = vadd.s32 %v150, %v154
    %v156 = vadd.s32 %v155, 536870912
    %v157 = vshrl.u32 %v156, 30
    %v158 = vshll.u32 %v157, 30
    %v159 = vsub.s32 %v155, %v158
    %vm160 = vcmp.lt.s32.totalorder %v159, 0
    %v161 = vsub.s32 0, %v159
    %v162 = vsel %vm160, %v161, %v159
    %v163 = vclz %v162
    %v164 = vsub.s32 %v163, 2
    %vm165 = vcmp.gt.s32.totalorder 0, %v164
    %v166 = vsel %vm165, 0, %v164
    %v167 = vsub.s32 32, %v166
    %v168 = vshll.u32 %v159, %v166
    %v169 = vshrl.u32 %v151, %v167
    %v170 = vor.u32 %v168, %v169
    %v171 = vsub.s32 4294967266, %v166
    %v172 = vadd.s32 %v171, 127
    %v173 = vshll.u32 %v172, 23
    %v174 = vor.u32 4788187, %v173
    %v175 = vand.u32 2147483647, %v174
    %v177 = vcvt.s32.f32 %v170
    %v178 = vmul.f32 %v177, %v175
    %v179 = vxor.u32 %v178, 2147483648
    %v180 = vsel %vm97, %v179, %v178
    %v181 = vsub.s32 4, %v157
    %v182 = vsel %vm97, %v181, %v157
    %v183 = vsel %vm96, %v94, %v180
    %v184 = vsel %vm96, 0, %v182
    %v185 = vcosq.f32.pop %v183
    %v186 = vsinq.f32.pop %v183
    %vm187 = vweird.f32 %v94
    %v188 = vand.u32 %v184, 3
    %vm189 = vcmp.lt.s32.totalorder %v188, 2
    %vm190 = vcmp.eq.s32.totalorder %v188, 0
    %v191 = vxor.u32 %v186, 2147483648
    %v192 = vsel %vm190, %v185, %v191
    %vm193 = vcmp.eq.s32.totalorder %v188, 2
    %v194 = vxor.u32 %v185, 2147483648
    %v195 = vsel %vm193, %v194, %v186
    %v196 = vsel %vm189, %v192, %v195
    %v197 = vsel %vm187, nan, %v196
    %v198 = vld [vmem:[#allocation7] sm:$0xff]
    %v199 = vld [vmem:[#allocation7 + $0x8] sm:$0xff]
    %v200 = vand.u32 2147483647, %v94
    %vm201 = vcmp.le.f32.partialorder %v200, 0.7853982
    %vm202 = vcmp.lt.s32.totalorder %v94, 0
    %v203 = vand.u32 %v94, 2139095040
    %v204 = vshrl.u32 %v203, 23
    %v205 = vsub.s32 %v204, 127
    %v206 = vand.u32 2147483647, %v94
    %v207 = vand.u32 %v206, 8388607
    %v208 = vor.u32 %v207, 8388608
    %v209 = vsub.s32 0, %v208
    %v210 = vadd.s32 %v205, 1
    %vm211 = vcmp.gt.s32.totalorder %v210, 0
    %v212 = vsel %vm211, %v210, 0
    %v213 = vshrl.u32 %v212, 5
    %v214 = vand.u32 %v212, 31
    %v215 = vsub.s32 32, %v214
    %v216 = vshrl.u32 683565275, %v215
    %v217 = vshll.u32 683565275, %v214
    %v218 = vshrl.u32 2475754826, %v215
    %v219 = vor.u32 %v217, %v218
    %v220 = vshll.u32 2475754826, %v214
    %v221 = vshrl.u32 2131351028, %v215
    %v222 = vor.u32 %v220, %v221
    %v223 = vshll.u32 2131351028, %v214
    %v224 = vshrl.u32 2102212464, %v215
    %v225 = vor.u32 %v223, %v224
    %v226 = vshll.u32 2102212464, %v214
    %v227 = vshrl.u32 920167782, %v215
    %v228 = vor.u32 %v226, %v227
    %v229 = vshll.u32 920167782, %v214
    %v230 = vshrl.u32 1326507024, %v215
    %v231 = vor.u32 %v229, %v230
    %vm232 = vcmp.lt.s32.totalorder %v213, 1
    %vm233 = vcmp.lt.s32.totalorder %v213, 2
    %vm234 = vcmp.lt.s32.totalorder %v213, 3
    %vm235 = vcmp.lt.s32.totalorder %v213, 4
    %v236 = vsel %vm232, %v216, %v219
    %v237 = vsel %vm235, %v225, 2102212464
    %v238 = vsel %vm234, %v222, %v237
    %v239 = vsel %vm233, %v236, %v238
    %v240 = vsel %vm232, %v219, %v222
    %v241 = vsel %vm235, %v228, 920167782
    %v242 = vsel %vm234, %v225, %v241
    %v243 = vsel %vm233, %v240, %v242
    %v244 = vsel %vm232, %v222, %v225
    %v245 = vsel %vm235, %v231, 1326507024
    %v246 = vsel %vm234, %v228, %v245
    %v247 = vsel %vm233, %v244, %v246
    %v248 = vshll.u32 %v208, 8
    %v249 = vmul.u32.u64.compose %v248, %v247
    %v250 = vextract.low.u32 %v249
    %v251 = vextract.high.u32 %v249
    %v252 = vmul.u32.u64.compose %v248, %v243
    %v253 = vextract.low.u32 %v252
    %v254 = vextract.high.u32 %v252
    %v255 = vmul.u32 %v248, %v239
    %v256 = vadd.s32 %v251, %v253
    %vm257 = vc.u32 %v251, %v253
    %v258 = vadd.s32 %v254, 1
    %v259 = vsel %vm257, %v258, %v254
    %v260 = vadd.s32 %v255, %v259
    %v261 = vadd.s32 %v260, 536870912
    %v262 = vshrl.u32 %v261, 30
    %v263 = vshll.u32 %v262, 30
    %v264 = vsub.s32 %v260, %v263
    %vm265 = vcmp.lt.s32.totalorder %v264, 0
    %v266 = vsub.s32 0, %v264
    %v267 = vsel %vm265, %v266, %v264
    %v268 = vclz %v267
    %v269 = vsub.s32 %v268, 2
    %vm270 = vcmp.gt.s32.totalorder 0, %v269
    %v271 = vsel %vm270, 0, %v269
    %v272 = vsub.s32 32, %v271
    %v273 = vshll.u32 %v264, %v271
    %v274 = vshrl.u32 %v256, %v272
    %v275 = vor.u32 %v273, %v274
    %v276 = vsub.s32 4294967266, %v271
    %v277 = vadd.s32 %v276, 127
    %v278 = vshll.u32 %v277, 23
    %v279 = vor.u32 4788187, %v278
    %v280 = vand.u32 2147483647, %v279
    %v282 = vcvt.s32.f32 %v275
    %v283 = vmul.f32 %v282, %v280
    %v284 = vxor.u32 %v283, 2147483648
    %v285 = vsel %vm202, %v284, %v283
    %v286 = vsub.s32 4, %v262
    %v287 = vsel %vm202, %v286, %v262
    %v288 = vsel %vm201, %v94, %v285
    %v289 = vsel %vm201, 0, %v287
    %v290 = vcosq.f32.pop %v288
    %v291 = vsinq.f32.pop %v288
    %vm292 = vweird.f32 %v94
    %v293 = vadd.s32 %v289, 3
    %v294 = vand.u32 %v293, 3
    %vm295 = vcmp.lt.s32.totalorder %v294, 2
    %vm296 = vcmp.eq.s32.totalorder %v294, 0
    %v297 = vxor.u32 %v291, 2147483648
    %v298 = vsel %vm296, %v290, %v297
    %vm299 = vcmp.eq.s32.totalorder %v294, 2
    %v300 = vxor.u32 %v290, 2147483648
    %v301 = vsel %vm299, %v300, %v291
    %v302 = vsel %vm295, %v298, %v301
    %v303 = vsel %vm292, nan, %v302
    %v304 = vld [vmem:[#allocation8] sm:$0xff]
    %v305 = vld [vmem:[#allocation8 + $0x8] sm:$0xff]
    %vm306 = vcmask 130048
    %v308 = vsel %vm306, %v303, 0
    %310 = vmatprep.subr.mxu0 0.0
    %311 = vmatpush1.msra.mxu0 0.0
    %312 = vmatprep.subr.mxu0 0.0
    %313 = vmatpush1.msra.mxu0 0.0
    %314 = vmatprep.subr.mxu0 0.0
    %315 = vmatpush1.msra.mxu0 0.0
    %316 = vmatprep.subr.mxu0 0.0
    %317 = vmatpush1.msra.mxu0 0.0
    %318 = vmatprep.subr.mxu0 0.0
    %319 = vmatpush1.msra.mxu0 0.0
    %320 = vmatprep.subr.mxu0 0.0
    %321 = vmatpush1.msra.mxu0 0.0
    %322 = vmatprep.subr.mxu0 0.0
    %323 = vmatpush1.msra.mxu0 0.0
    %324 = vmatprep.subr.mxu0 0.0
    %325 = vmatpush1.msra.mxu0 0.0
    %326 = vmatprep.subr.mxu0 0.0
    %327 = vmatpush1.msra.mxu0 0.0
    %328 = vmatprep.subr.mxu0 0.0
    %329 = vmatpush1.msra.mxu0 0.0
    %330 = vmatprep.subr.mxu0 0.0
    %331 = vmatpush1.msra.mxu0 0.0
    %332 = vmatprep.subr.mxu0 0.0
    %333 = vmatpush1.msra.mxu0 0.0
    %334 = vmatprep.subr.mxu0 0.0
    %335 = vmatpush1.msra.mxu0 0.0
    %336 = vmatprep.subr.mxu0 0.0
    %337 = vmatpush1.msra.mxu0 0.0
    %338 = vmatprep.subr.mxu0 0.0
    %339 = vmatpush1.msra.mxu0 %v305
    %340 = vmatprep.subr.mxu0 0.0
    %341 = vmatpush1.msra.mxu0 %v304
    %342 = vmatprep.subr.mxu0 0.0
    %343 = vmatpush2.msra.mxu0 0.0
    %344 = vmatprep.subr.mxu0 0.0
    %345 = vmatpush2.msra.mxu0 0.0
    %346 = vmatprep.subr.mxu0 0.0
    %347 = vmatpush2.msra.mxu0 0.0
    %348 = vmatprep.subr.mxu0 0.0
    %349 = vmatpush2.msra.mxu0 0.0
    %350 = vmatprep.subr.mxu0 0.0
    %351 = vmatpush2.msra.mxu0 0.0
    %352 = vmatprep.subr.mxu0 0.0
    %353 = vmatpush2.msra.mxu0 0.0
    %354 = vmatprep.subr.mxu0 0.0
    %355 = vmatpush2.msra.mxu0 0.0
    %356 = vmatprep.subr.mxu0 0.0
    %357 = vmatpush2.msra.mxu0 0.0
    %358 = vmatprep.subr.mxu0 0.0
    %359 = vmatpush2.msra.mxu0 0.0
    %360 = vmatprep.subr.mxu0 0.0
    %361 = vmatpush2.msra.mxu0 0.0
    %362 = vmatprep.subr.mxu0 0.0
    %363 = vmatpush2.msra.mxu0 0.0
    %364 = vmatprep.subr.mxu0 0.0
    %365 = vmatpush2.msra.mxu0 0.0
    %366 = vmatprep.subr.mxu0 0.0
    %367 = vmatpush2.msra.mxu0 0.0
    %368 = vmatprep.subr.mxu0 0.0
    %369 = vmatpush2.msra.mxu0 0.0
    %370 = vmatprep.subr.mxu0 0.0
    %371 = vmatpush2.msra.mxu0 0.0
    %372 = vmatprep.subr.mxu0 0.0
    %373 = vmatpush2.msra.mxu0 0.0
    %374 = vmatprep.mubr.f32.mxu0 0.0
    %375 = vmatmul.mubr.f32.gmra.mxu0 %v308
    %v376 = vpop.f32.mrf.mxu0
    %v377 = vadd.f32 0.0, %v376
    %v378 = vpop.f32.mrf.mxu0
    %379 = vdwg.mxu0
    %v381 = vsel %vm306, %v197, 0
    %383 = vmatprep.subr.mxu0 0.0
    %384 = vmatpush1.msra.mxu0 0.0
    %385 = vmatprep.subr.mxu0 0.0
    %386 = vmatpush1.msra.mxu0 0.0
    %387 = vmatprep.subr.mxu0 0.0
    %388 = vmatpush1.msra.mxu0 0.0
    %389 = vmatprep.subr.mxu0 0.0
    %390 = vmatpush1.msra.mxu0 0.0
    %391 = vmatprep.subr.mxu0 0.0
    %392 = vmatpush1.msra.mxu0 0.0
    %393 = vmatprep.subr.mxu0 0.0
    %394 = vmatpush1.msra.mxu0 0.0
    %395 = vmatprep.subr.mxu0 0.0
    %396 = vmatpush1.msra.mxu0 0.0
    %397 = vmatprep.subr.mxu0 0.0
    %398 = vmatpush1.msra.mxu0 0.0
    %399 = vmatprep.subr.mxu0 0.0
    %400 = vmatpush1.msra.mxu0 0.0
    %401 = vmatprep.subr.mxu0 0.0
    %402 = vmatpush1.msra.mxu0 0.0
    %403 = vmatprep.subr.mxu0 0.0
    %404 = vmatpush1.msra.mxu0 0.0
    %405 = vmatprep.subr.mxu0 0.0
    %406 = vmatpush1.msra.mxu0 0.0
    %407 = vmatprep.subr.mxu0 0.0
    %408 = vmatpush1.msra.mxu0 0.0
    %409 = vmatprep.subr.mxu0 0.0
    %410 = vmatpush1.msra.mxu0 0.0
    %411 = vmatprep.subr.mxu0 0.0
    %412 = vmatpush1.msra.mxu0 %v199
    %413 = vmatprep.subr.mxu0 0.0
    %414 = vmatpush1.msra.mxu0 %v198
    %415 = vmatprep.subr.mxu0 0.0
    %416 = vmatpush2.msra.mxu0 0.0
    %417 = vmatprep.subr.mxu0 0.0
    %418 = vmatpush2.msra.mxu0 0.0
    %419 = vmatprep.subr.mxu0 0.0
    %420 = vmatpush2.msra.mxu0 0.0
    %421 = vmatprep.subr.mxu0 0.0
    %422 = vmatpush2.msra.mxu0 0.0
    %423 = vmatprep.subr.mxu0 0.0
    %424 = vmatpush2.msra.mxu0 0.0
    %425 = vmatprep.subr.mxu0 0.0
    %426 = vmatpush2.msra.mxu0 0.0
    %427 = vmatprep.subr.mxu0 0.0
    %428 = vmatpush2.msra.mxu0 0.0
    %429 = vmatprep.subr.mxu0 0.0
    %430 = vmatpush2.msra.mxu0 0.0
    %431 = vmatprep.subr.mxu0 0.0
    %432 = vmatpush2.msra.mxu0 0.0
    %433 = vmatprep.subr.mxu0 0.0
    %434 = vmatpush2.msra.mxu0 0.0
    %435 = vmatprep.subr.mxu0 0.0
    %436 = vmatpush2.msra.mxu0 0.0
    %437 = vmatprep.subr.mxu0 0.0
    %438 = vmatpush2.msra.mxu0 0.0
    %439 = vmatprep.subr.mxu0 0.0
    %440 = vmatpush2.msra.mxu0 0.0
    %441 = vmatprep.subr.mxu0 0.0
    %442 = vmatpush2.msra.mxu0 0.0
    %443 = vmatprep.subr.mxu0 0.0
    %444 = vmatpush2.msra.mxu0 0.0
    %445 = vmatprep.subr.mxu0 0.0
    %446 = vmatpush2.msra.mxu0 0.0
    %447 = vmatprep.mubr.f32.mxu0 0.0
    %448 = vmatmul.mubr.f32.gmra.mxu0 %v381
    %v449 = vpop.f32.mrf.mxu0
    %v450 = vadd.f32 %v377, %v449
    %v451 = vpop.f32.mrf.mxu0
    %452 = vdwg.mxu0
    %v453 = vld [vmem:[%s6] sm:$0x1]
    %v455 = vlaneseq
    %v456 = vshrl.u32 %v455, 7
    %v457 = vsub.s32 0, %v456
    %v458 = vrot.slane %v453, %v457
    %v460 = vadd.f32 %v450, %v458
    %v461 = vld [vmem:[#allocation2] sm:$0xff]
    %v462 = vld [vmem:[#allocation5] sm:$0xf]
    %v463 = vld [vmem:[#allocation5 + $0x4] sm:$0xf]
    %v464 = vld [vmem:[#allocation5 + $0x8] sm:$0xf]
    %v465 = vld [vmem:[#allocation5 + $0xc] sm:$0xf]
    %v466 = vld [vmem:[#allocation5 + $0x10] sm:$0xf]
    %v467 = vld [vmem:[#allocation5 + $0x14] sm:$0xf]
    %v468 = vld [vmem:[#allocation5 + $0x18] sm:$0xf]
    %v469 = vld [vmem:[#allocation5 + $0x1c] sm:$0xf]
    %v470 = vld [vmem:[#allocation5 + $0x20] sm:$0xf]
    %v471 = vld [vmem:[#allocation5 + $0x24] sm:$0xf]
    %v472 = vld [vmem:[#allocation5 + $0x28] sm:$0xf]
    %v473 = vld [vmem:[#allocation5 + $0x2c] sm:$0xf]
    %v474 = vld [vmem:[#allocation5 + $0x30] sm:$0xf]
    %v475 = vld [vmem:[#allocation5 + $0x34] sm:$0xf]
    %v476 = vld [vmem:[#allocation5 + $0x38] sm:$0xf]
    %v477 = vld [vmem:[#allocation5 + $0x3c] sm:$0xf]
    %v478 = vld [vmem:[#allocation5 + $0x40] sm:$0xf]
    %v479 = vld [vmem:[#allocation5 + $0x44] sm:$0xf]
    %v480 = vld [vmem:[#allocation5 + $0x48] sm:$0xf]
    %v481 = vld [vmem:[#allocation5 + $0x4c] sm:$0xf]
    %v482 = vld [vmem:[#allocation5 + $0x50] sm:$0xf]
    %v483 = vld [vmem:[#allocation5 + $0x54] sm:$0xf]
    %v484 = vld [vmem:[#allocation5 + $0x58] sm:$0xf]
    %v485 = vld [vmem:[#allocation5 + $0x5c] sm:$0xf]
    %v486 = vld [vmem:[#allocation5 + $0x60] sm:$0xf]
    %v487 = vld [vmem:[#allocation5 + $0x64] sm:$0xf]
    %v488 = vld [vmem:[#allocation5 + $0x68] sm:$0xf]
    %v489 = vld [vmem:[#allocation5 + $0x6c] sm:$0xf]
    %v490 = vld [vmem:[#allocation5 + $0x70] sm:$0xf]
    %v491 = vld [vmem:[#allocation5 + $0x74] sm:$0xf]
    %v492 = vld [vmem:[#allocation5 + $0x78] sm:$0xf]
    %v493 = vld [vmem:[#allocation5 + $0x7c] sm:$0xf]
    %v494 = vld [vmem:[#allocation5 + $0x80] sm:$0xf]
    %v495 = vld [vmem:[#allocation5 + $0x84] sm:$0xf]
    %v496 = vld [vmem:[#allocation5 + $0x88] sm:$0xf]
    %v497 = vld [vmem:[#allocation5 + $0x8c] sm:$0xf]
    %v498 = vld [vmem:[#allocation5 + $0x90] sm:$0xf]
    %v499 = vld [vmem:[#allocation5 + $0x94] sm:$0xf]
    %v500 = vld [vmem:[#allocation5 + $0x98] sm:$0xf]
    %v501 = vld [vmem:[#allocation5 + $0x9c] sm:$0xf]
    %v502 = vld [vmem:[#allocation5 + $0xa0] sm:$0xf]
    %v503 = vld [vmem:[#allocation5 + $0xa4] sm:$0xf]
    %v504 = vld [vmem:[#allocation5 + $0xa8] sm:$0xf]
    %v505 = vld [vmem:[#allocation5 + $0xac] sm:$0xf]
    %v506 = vld [vmem:[#allocation5 + $0xb0] sm:$0xf]
    %v507 = vld [vmem:[#allocation5 + $0xb4] sm:$0xf]
    %v508 = vld [vmem:[#allocation5 + $0xb8] sm:$0xf]
    %v509 = vld [vmem:[#allocation5 + $0xbc] sm:$0xf]
    %v510 = vld [vmem:[#allocation5 + $0xc0] sm:$0xf]
    %v511 = vld [vmem:[#allocation5 + $0xc4] sm:$0xf]
    %v512 = vld [vmem:[#allocation5 + $0xc8] sm:$0xf]
    %v513 = vld [vmem:[#allocation5 + $0xcc] sm:$0xf]
    %v514 = vld [vmem:[#allocation5 + $0xd0] sm:$0xf]
    %v515 = vld [vmem:[#allocation5 + $0xd4] sm:$0xf]
    %v516 = vld [vmem:[#allocation5 + $0xd8] sm:$0xf]
    %v517 = vld [vmem:[#allocation5 + $0xdc] sm:$0xf]
    %v518 = vld [vmem:[#allocation5 + $0xe0] sm:$0xf]
    %v519 = vld [vmem:[#allocation5 + $0xe4] sm:$0xf]
    %v520 = vld [vmem:[#allocation5 + $0xe8] sm:$0xf]
    %v521 = vld [vmem:[#allocation5 + $0xec] sm:$0xf]
    %v522 = vld [vmem:[#allocation5 + $0xf0] sm:$0xf]
    %v523 = vld [vmem:[#allocation5 + $0xf4] sm:$0xf]
    %v524 = vld [vmem:[#allocation5 + $0xf8] sm:$0xf]
    %v525 = vld [vmem:[#allocation5 + $0xfc] sm:$0xf]
    %v526 = vld [vmem:[#allocation5 + $0x100] sm:$0xf]
    %v527 = vld [vmem:[#allocation5 + $0x104] sm:$0xf]
    %v528 = vld [vmem:[#allocation5 + $0x108] sm:$0xf]
    %v529 = vld [vmem:[#allocation5 + $0x10c] sm:$0xf]
    %v530 = vld [vmem:[#allocation5 + $0x110] sm:$0xf]
    %v531 = vld [vmem:[#allocation5 + $0x114] sm:$0xf]
    %v532 = vld [vmem:[#allocation5 + $0x118] sm:$0xf]
    %v533 = vld [vmem:[#allocation5 + $0x11c] sm:$0xf]
    %v534 = vld [vmem:[#allocation5 + $0x120] sm:$0xf]
    %v535 = vld [vmem:[#allocation5 + $0x124] sm:$0xf]
    %v536 = vld [vmem:[#allocation5 + $0x128] sm:$0xf]
    %v537 = vld [vmem:[#allocation5 + $0x12c] sm:$0xf]
    %v538 = vld [vmem:[#allocation5 + $0x130] sm:$0xf]
    %v539 = vld [vmem:[#allocation5 + $0x134] sm:$0xf]
    %v540 = vld [vmem:[#allocation5 + $0x138] sm:$0xf]
    %v541 = vld [vmem:[#allocation5 + $0x13c] sm:$0xf]
    %v542 = vld [vmem:[#allocation5 + $0x140] sm:$0xf]
    %v543 = vld [vmem:[#allocation5 + $0x144] sm:$0xf]
    %v544 = vld [vmem:[#allocation5 + $0x148] sm:$0xf]
    %v545 = vld [vmem:[#allocation5 + $0x14c] sm:$0xf]
    %v546 = vld [vmem:[#allocation5 + $0x150] sm:$0xf]
    %v547 = vld [vmem:[#allocation5 + $0x154] sm:$0xf]
    %v548 = vld [vmem:[#allocation5 + $0x158] sm:$0xf]
    %v549 = vld [vmem:[#allocation5 + $0x15c] sm:$0xf]
    %v550 = vld [vmem:[#allocation5 + $0x160] sm:$0xf]
    %v551 = vld [vmem:[#allocation5 + $0x164] sm:$0xf]
    %v552 = vld [vmem:[#allocation5 + $0x168] sm:$0xf]
    %v553 = vld [vmem:[#allocation5 + $0x16c] sm:$0xf]
    %v554 = vld [vmem:[#allocation5 + $0x170] sm:$0xf]
    %v555 = vld [vmem:[#allocation5 + $0x174] sm:$0xf]
    %v556 = vld [vmem:[#allocation5 + $0x178] sm:$0xf]
    %v557 = vld [vmem:[#allocation5 + $0x17c] sm:$0xf]
    %v558 = vld [vmem:[#allocation5 + $0x180] sm:$0xf]
    %v559 = vld [vmem:[#allocation5 + $0x184] sm:$0xf]
    %v560 = vld [vmem:[#allocation5 + $0x188] sm:$0xf]
    %v561 = vld [vmem:[#allocation5 + $0x18c] sm:$0xf]
    %v562 = vld [vmem:[#allocation5 + $0x190] sm:$0xf]
    %v563 = vld [vmem:[#allocation5 + $0x194] sm:$0xf]
    %v564 = vld [vmem:[#allocation5 + $0x198] sm:$0xf]
    %v565 = vld [vmem:[#allocation5 + $0x19c] sm:$0xf]
    %v566 = vld [vmem:[#allocation5 + $0x1a0] sm:$0xf]
    %v567 = vld [vmem:[#allocation5 + $0x1a4] sm:$0xf]
    %v568 = vld [vmem:[#allocation5 + $0x1a8] sm:$0xf]
    %v569 = vld [vmem:[#allocation5 + $0x1ac] sm:$0xf]
    %v570 = vld [vmem:[#allocation5 + $0x1b0] sm:$0xf]
    %v571 = vld [vmem:[#allocation5 + $0x1b4] sm:$0xf]
    %v572 = vld [vmem:[#allocation5 + $0x1b8] sm:$0xf]
    %v573 = vld [vmem:[#allocation5 + $0x1bc] sm:$0xf]
    %v574 = vld [vmem:[#allocation5 + $0x1c0] sm:$0xf]
    %v575 = vld [vmem:[#allocation5 + $0x1c4] sm:$0xf]
    %v576 = vld [vmem:[#allocation5 + $0x1c8] sm:$0xf]
    %v577 = vld [vmem:[#allocation5 + $0x1cc] sm:$0xf]
    %v578 = vld [vmem:[#allocation5 + $0x1d0] sm:$0xf]
    %v579 = vld [vmem:[#allocation5 + $0x1d4] sm:$0xf]
    %v580 = vld [vmem:[#allocation5 + $0x1d8] sm:$0xf]
    %v581 = vld [vmem:[#allocation5 + $0x1dc] sm:$0xf]
    %v582 = vld [vmem:[#allocation5 + $0x1e0] sm:$0xf]
    %v583 = vld [vmem:[#allocation5 + $0x1e4] sm:$0xf]
    %v584 = vld [vmem:[#allocation5 + $0x1e8] sm:$0xf]
    %v585 = vld [vmem:[#allocation5 + $0x1ec] sm:$0xf]
    %v586 = vld [vmem:[#allocation5 + $0x1f0] sm:$0xf]
    %v587 = vld [vmem:[#allocation5 + $0x1f4] sm:$0xf]
    %v588 = vld [vmem:[#allocation5 + $0x1f8] sm:$0xf]
    %v589 = vld [vmem:[#allocation5 + $0x1fc] sm:$0xf]
    %v591 = vcombine.high %v461, %v461
    %v593 = vunpack.c.l.s4 1966171168
    %v594 = vunpack.c.0.s8 %v593
    %v595 = vlaneseq
    %v596 = vshrl.u32 %v595, 7
    %v597 = vsub.s32 %v594, %v596
    %v598 = vrot.slane %v461, %v597
    %v600 = vunpack.c.l.s4 1966171168
    %v601 = vunpack.c.0.s8 %v600
    %v602 = vlaneseq
    %v603 = vshrl.u32 %v602, 7
    %v604 = vsub.s32 %v601, %v603
    %v605 = vrot.slane %v591, %v604
    %v606 = vcombine.high %v598, %v598
    %v607 = vcombine.high %v605, %v605
    %v609 = vunpack.c.l.s4 1966171168
    %v610 = vunpack.c.0.s8 %v609
    %v611 = vlaneseq
    %v612 = vshrl.u32 %v611, 7
    %v613 = vsub.s32 %v610, %v612
    %v614 = vrot.slane %v598, %v613
    %v616 = vunpack.c.l.s4 1966171168
    %v617 = vunpack.c.0.s8 %v616
    %v618 = vlaneseq
    %v619 = vshrl.u32 %v618, 7
    %v620 = vsub.s32 %v617, %v619
    %v621 = vrot.slane %v605, %v620
    %v623 = vunpack.c.l.s4 1966171168
    %v624 = vunpack.c.0.s8 %v623
    %v625 = vlaneseq
    %v626 = vshrl.u32 %v625, 7
    %v627 = vsub.s32 %v624, %v626
    %v628 = vrot.slane %v606, %v627
    %v630 = vunpack.c.l.s4 1966171168
    %v631 = vunpack.c.0.s8 %v630
    %v632 = vlaneseq
    %v633 = vshrl.u32 %v632, 7
    %v634 = vsub.s32 %v631, %v633
    %v635 = vrot.slane %v607, %v634
    %v636 = vcombine.high %v614, %v614
    %v637 = vcombine.high %v621, %v621
    %v638 = vcombine.high %v628, %v628
    %v639 = vcombine.high %v635, %v635
    %v776 = vunpack.c.l.b16 %v462
    %v777 = vunpack.c.l.b16 %v463
    %v778 = vunpack.c.l.b16 %v464
    %v779 = vunpack.c.l.b16 %v465
    %v780 = vunpack.c.l.b16 %v466
    %v781 = vunpack.c.l.b16 %v467
    %v782 = vunpack.c.l.b16 %v468
    %v783 = vunpack.c.l.b16 %v469
    %v784 = vunpack.c.l.b16 %v470
    %v785 = vunpack.c.l.b16 %v471
    %v786 = vunpack.c.l.b16 %v472
    %v787 = vunpack.c.l.b16 %v473
    %v788 = vunpack.c.l.b16 %v474
    %v789 = vunpack.c.l.b16 %v475
    %v790 = vunpack.c.l.b16 %v476
    %v791 = vunpack.c.l.b16 %v477
    %v792 = vunpack.c.l.b16 %v478
    %v793 = vunpack.c.l.b16 %v479
    %v794 = vunpack.c.l.b16 %v480
    %v795 = vunpack.c.l.b16 %v481
    %v796 = vunpack.c.l.b16 %v482
    %v797 = vunpack.c.l.b16 %v483
    %v798 = vunpack.c.l.b16 %v484
    %v799 = vunpack.c.l.b16 %v485
    %v800 = vunpack.c.l.b16 %v486
    %v801 = vunpack.c.l.b16 %v487
    %v802 = vunpack.c.l.b16 %v488
    %v803 = vunpack.c.l.b16 %v489
    %v804 = vunpack.c.l.b16 %v490
    %v805 = vunpack.c.l.b16 %v491
    %v806 = vunpack.c.l.b16 %v492
    %v807 = vunpack.c.l.b16 %v493
    %v808 = vunpack.c.l.b16 %v494
    %v809 = vunpack.c.l.b16 %v495
    %v810 = vunpack.c.l.b16 %v496
    %v811 = vunpack.c.l.b16 %v497
    %v812 = vunpack.c.l.b16 %v498
    %v813 = vunpack.c.l.b16 %v499
    %v814 = vunpack.c.l.b16 %v500
    %v815 = vunpack.c.l.b16 %v501
    %v816 = vunpack.c.l.b16 %v502
    %v817 = vunpack.c.l.b16 %v503
    %v818 = vunpack.c.l.b16 %v504
    %v819 = vunpack.c.l.b16 %v505
    %v820 = vunpack.c.l.b16 %v506
    %v821 = vunpack.c.l.b16 %v507
    %v822 = vunpack.c.l.b16 %v508
    %v823 = vunpack.c.l.b16 %v509
    %v824 = vunpack.c.l.b16 %v510
    %v825 = vunpack.c.l.b16 %v511
    %v826 = vunpack.c.l.b16 %v512
    %v827 = vunpack.c.l.b16 %v513
    %v828 = vunpack.c.l.b16 %v514
    %v829 = vunpack.c.l.b16 %v515
    %v830 = vunpack.c.l.b16 %v516
    %v831 = vunpack.c.l.b16 %v517
    %v832 = vunpack.c.l.b16 %v518
    %v833 = vunpack.c.l.b16 %v519
    %v834 = vunpack.c.l.b16 %v520
    %v835 = vunpack.c.l.b16 %v521
    %v836 = vunpack.c.l.b16 %v522
    %v837 = vunpack.c.l.b16 %v523
    %v838 = vunpack.c.l.b16 %v524
    %v839 = vunpack.c.l.b16 %v525
    %v840 = vunpack.c.l.b16 %v526
    %v841 = vunpack.c.l.b16 %v527
    %v842 = vunpack.c.l.b16 %v528
    %v843 = vunpack.c.l.b16 %v529
    %v844 = vunpack.c.l.b16 %v530
    %v845 = vunpack.c.l.b16 %v531
    %v846 = vunpack.c.l.b16 %v532
    %v847 = vunpack.c.l.b16 %v533
    %v848 = vunpack.c.l.b16 %v534
    %v849 = vunpack.c.l.b16 %v535
    %v850 = vunpack.c.l.b16 %v536
    %v851 = vunpack.c.l.b16 %v537
    %v852 = vunpack.c.l.b16 %v538
    %v853 = vunpack.c.l.b16 %v539
    %v854 = vunpack.c.l.b16 %v540
    %v855 = vunpack.c.l.b16 %v541
    %v856 = vunpack.c.l.b16 %v542
    %v857 = vunpack.c.l.b16 %v543
    %v858 = vunpack.c.l.b16 %v544
    %v859 = vunpack.c.l.b16 %v545
    %v860 = vunpack.c.l.b16 %v546
    %v861 = vunpack.c.l.b16 %v547
    %v862 = vunpack.c.l.b16 %v548
    %v863 = vunpack.c.l.b16 %v549
    %v864 = vunpack.c.l.b16 %v550
    %v865 = vunpack.c.l.b16 %v551
    %v866 = vunpack.c.l.b16 %v552
    %v867 = vunpack.c.l.b16 %v553
    %v868 = vunpack.c.l.b16 %v554
    %v869 = vunpack.c.l.b16 %v555
    %v870 = vunpack.c.l.b16 %v556
    %v871 = vunpack.c.l.b16 %v557
    %v872 = vunpack.c.l.b16 %v558
    %v873 = vunpack.c.l.b16 %v559
    %v874 = vunpack.c.l.b16 %v560
    %v875 = vunpack.c.l.b16 %v561
    %v876 = vunpack.c.l.b16 %v562
    %v877 = vunpack.c.l.b16 %v563
    %v878 = vunpack.c.l.b16 %v564
    %v879 = vunpack.c.l.b16 %v565
    %v880 = vunpack.c.l.b16 %v566
    %v881 = vunpack.c.l.b16 %v567
    %v882 = vunpack.c.l.b16 %v568
    %v883 = vunpack.c.l.b16 %v569
    %v884 = vunpack.c.l.b16 %v570
    %v885 = vunpack.c.l.b16 %v571
    %v886 = vunpack.c.l.b16 %v572
    %v887 = vunpack.c.l.b16 %v573
    %v888 = vunpack.c.l.b16 %v574
    %v889 = vunpack.c.l.b16 %v575
    %v890 = vunpack.c.l.b16 %v576
    %v891 = vunpack.c.l.b16 %v577
    %v892 = vunpack.c.l.b16 %v578
    %v893 = vunpack.c.l.b16 %v579
    %v894 = vunpack.c.l.b16 %v580
    %v895 = vunpack.c.l.b16 %v581
    %v896 = vunpack.c.l.b16 %v582
    %v897 = vunpack.c.l.b16 %v583
    %v898 = vunpack.c.l.b16 %v584
    %v899 = vunpack.c.l.b16 %v585
    %v900 = vunpack.c.l.b16 %v586
    %v901 = vunpack.c.l.b16 %v587
    %v902 = vunpack.c.l.b16 %v588
    %v903 = vunpack.c.l.b16 %v589
    %v904 = vpack.c.b16 %v777, %v776
    %v905 = vpack.c.b16 %v779, %v778
    %v906 = vpack.c.b16 %v781, %v780
    %v907 = vpack.c.b16 %v783, %v782
    %v908 = vpack.c.b16 %v785, %v784
    %v909 = vpack.c.b16 %v787, %v786
    %v910 = vpack.c.b16 %v789, %v788
    %v911 = vpack.c.b16 %v791, %v790
    %v912 = vpack.c.b16 %v793, %v792
    %v913 = vpack.c.b16 %v795, %v794
    %v914 = vpack.c.b16 %v797, %v796
    %v915 = vpack.c.b16 %v799, %v798
    %v916 = vpack.c.b16 %v801, %v800
    %v917 = vpack.c.b16 %v803, %v802
    %v918 = vpack.c.b16 %v805, %v804
    %v919 = vpack.c.b16 %v807, %v806
    %v920 = vpack.c.b16 %v809, %v808
    %v921 = vpack.c.b16 %v811, %v810
    %v922 = vpack.c.b16 %v813, %v812
    %v923 = vpack.c.b16 %v815, %v814
    %v924 = vpack.c.b16 %v817, %v816
    %v925 = vpack.c.b16 %v819, %v818
    %v926 = vpack.c.b16 %v821, %v820
    %v927 = vpack.c.b16 %v823, %v822
    %v928 = vpack.c.b16 %v825, %v824
    %v929 = vpack.c.b16 %v827, %v826
    %v930 = vpack.c.b16 %v829, %v828
    %v931 = vpack.c.b16 %v831, %v830
    %v932 = vpack.c.b16 %v833, %v832
    %v933 = vpack.c.b16 %v835, %v834
    %v934 = vpack.c.b16 %v837, %v836
    %v935 = vpack.c.b16 %v839, %v838
    %v936 = vpack.c.b16 %v841, %v840
    %v937 = vpack.c.b16 %v843, %v842
    %v938 = vpack.c.b16 %v845, %v844
    %v939 = vpack.c.b16 %v847, %v846
    %v940 = vpack.c.b16 %v849, %v848
    %v941 = vpack.c.b16 %v851, %v850
    %v942 = vpack.c.b16 %v853, %v852
    %v943 = vpack.c.b16 %v855, %v854
    %v944 = vpack.c.b16 %v857, %v856
    %v945 = vpack.c.b16 %v859, %v858
    %v946 = vpack.c.b16 %v861, %v860
    %v947 = vpack.c.b16 %v863, %v862
    %v948 = vpack.c.b16 %v865, %v864
    %v949 = vpack.c.b16 %v867, %v866
    %v950 = vpack.c.b16 %v869, %v868
    %v951 = vpack.c.b16 %v871, %v870
    %v952 = vpack.c.b16 %v873, %v872
    %v953 = vpack.c.b16 %v875, %v874
    %v954 = vpack.c.b16 %v877, %v876
    %v955 = vpack.c.b16 %v879, %v878
    %v956 = vpack.c.b16 %v881, %v880
    %v957 = vpack.c.b16 %v883, %v882
    %v958 = vpack.c.b16 %v885, %v884
    %v959 = vpack.c.b16 %v887, %v886
    %v960 = vpack.c.b16 %v889, %v888
    %v961 = vpack.c.b16 %v891, %v890
    %v962 = vpack.c.b16 %v893, %v892
    %v963 = vpack.c.b16 %v895, %v894
    %v964 = vpack.c.b16 %v897, %v896
    %v965 = vpack.c.b16 %v899, %v898
    %v966 = vpack.c.b16 %v901, %v900
    %v967 = vpack.c.b16 %v903, %v902
    %1032 = vmatprep.subr.bf16.mxu0 0
    %1033 = vmatpush1.bf16.msra.mxu0 %v911
    %1034 = vmatprep.subr.bf16.mxu0 0
    %1035 = vmatpush1.bf16.msra.mxu0 %v910
    %1036 = vmatprep.subr.bf16.mxu0 0
    %1037 = vmatpush1.bf16.msra.mxu0 %v909
    %1038 = vmatprep.subr.bf16.mxu0 0
    %1039 = vmatpush1.bf16.msra.mxu0 %v908
    %1040 = vmatprep.subr.bf16.mxu0 0
    %1041 = vmatpush1.bf16.msra.mxu0 %v907
    %1042 = vmatprep.subr.bf16.mxu0 0
    %1043 = vmatpush1.bf16.msra.mxu0 %v906
    %1044 = vmatprep.subr.bf16.mxu0 0
    %1045 = vmatpush1.bf16.msra.mxu0 %v905
    %1046 = vmatprep.subr.bf16.mxu0 0
    %1047 = vmatpush1.bf16.msra.mxu0 %v904
    %1048 = vmatprep.subr.bf16.mxu0 0
    %1049 = vmatpush2.bf16.msra.mxu0 %v919
    %1050 = vmatprep.subr.bf16.mxu0 0
    %1051 = vmatpush2.bf16.msra.mxu0 %v918
    %1052 = vmatprep.subr.bf16.mxu0 0
    %1053 = vmatpush2.bf16.msra.mxu0 %v917
    %1054 = vmatprep.subr.bf16.mxu0 0
    %1055 = vmatpush2.bf16.msra.mxu0 %v916
    %1056 = vmatprep.subr.bf16.mxu0 0
    %1057 = vmatpush2.bf16.msra.mxu0 %v915
    %1058 = vmatprep.subr.bf16.mxu0 0
    %1059 = vmatpush2.bf16.msra.mxu0 %v914
    %1060 = vmatprep.subr.bf16.mxu0 0
    %1061 = vmatpush2.bf16.msra.mxu0 %v913
    %1062 = vmatprep.subr.bf16.mxu0 0
    %1063 = vmatpush2.bf16.msra.mxu0 %v912
    %1064 = vmatprep.mubr.bf16.mxu0 %v628
    %1065 = vmatmul.mubr.bf16.gmra.mxu0 %v614
    %v1066 = vpop.f32.mrf.mxu0
    %v1067 = vadd.f32 0.0, %v1066
    %v1068 = vpop.f32.mrf.mxu0
    %v1069 = vpop.f32.mrf.mxu0
    %v1070 = vpop.f32.mrf.mxu0
    %1071 = vdwg.mxu0
    %1072 = vmatprep.subr.bf16.mxu0 0
    %1073 = vmatpush1.bf16.msra.mxu0 %v927
    %1074 = vmatprep.subr.bf16.mxu0 0
    %1075 = vmatpush1.bf16.msra.mxu0 %v926
    %1076 = vmatprep.subr.bf16.mxu0 0
    %1077 = vmatpush1.bf16.msra.mxu0 %v925
    %1078 = vmatprep.subr.bf16.mxu0 0
    %1079 = vmatpush1.bf16.msra.mxu0 %v924
    %1080 = vmatprep.subr.bf16.mxu0 0
    %1081 = vmatpush1.bf16.msra.mxu0 %v923
    %1082 = vmatprep.subr.bf16.mxu0 0
    %1083 = vmatpush1.bf16.msra.mxu0 %v922
    %1084 = vmatprep.subr.bf16.mxu0 0
    %1085 = vmatpush1.bf16.msra.mxu0 %v921
    %1086 = vmatprep.subr.bf16.mxu0 0
    %1087 = vmatpush1.bf16.msra.mxu0 %v920
    %1088 = vmatprep.subr.bf16.mxu0 0
    %1089 = vmatpush2.bf16.msra.mxu0 %v935
    %1090 = vmatprep.subr.bf16.mxu0 0
    %1091 = vmatpush2.bf16.msra.mxu0 %v934
    %1092 = vmatprep.subr.bf16.mxu0 0
    %1093 = vmatpush2.bf16.msra.mxu0 %v933
    %1094 = vmatprep.subr.bf16.mxu0 0
    %1095 = vmatpush2.bf16.msra.mxu0 %v932
    %1096 = vmatprep.subr.bf16.mxu0 0
    %1097 = vmatpush2.bf16.msra.mxu0 %v931
    %1098 = vmatprep.subr.bf16.mxu0 0
    %1099 = vmatpush2.bf16.msra.mxu0 %v930
    %1100 = vmatprep.subr.bf16.mxu0 0
    %1101 = vmatpush2.bf16.msra.mxu0 %v929
    %1102 = vmatprep.subr.bf16.mxu0 0
    %1103 = vmatpush2.bf16.msra.mxu0 %v928
    %1104 = vmatprep.mubr.bf16.mxu0 %v638
    %1105 = vmatmul.mubr.bf16.gmra.mxu0 %v636
    %v1106 = vpop.f32.mrf.mxu0
    %v1107 = vadd.f32 %v1067, %v1106
    %v1108 = vpop.f32.mrf.mxu0
    %v1109 = vpop.f32.mrf.mxu0
    %v1110 = vpop.f32.mrf.mxu0
    %1111 = vdwg.mxu0
    %1112 = vmatprep.subr.bf16.mxu0 0
    %1113 = vmatpush1.bf16.msra.mxu0 %v943
    %1114 = vmatprep.subr.bf16.mxu0 0
    %1115 = vmatpush1.bf16.msra.mxu0 %v942
    %1116 = vmatprep.subr.bf16.mxu0 0
    %1117 = vmatpush1.bf16.msra.mxu0 %v941
    %1118 = vmatprep.subr.bf16.mxu0 0
    %1119 = vmatpush1.bf16.msra.mxu0 %v940
    %1120 = vmatprep.subr.bf16.mxu0 0
    %1121 = vmatpush1.bf16.msra.mxu0 %v939
    %1122 = vmatprep.subr.bf16.mxu0 0
    %1123 = vmatpush1.bf16.msra.mxu0 %v938
    %1124 = vmatprep.subr.bf16.mxu0 0
    %1125 = vmatpush1.bf16.msra.mxu0 %v937
    %1126 = vmatprep.subr.bf16.mxu0 0
    %1127 = vmatpush1.bf16.msra.mxu0 %v936
    %1128 = vmatprep.subr.bf16.mxu0 0
    %1129 = vmatpush2.bf16.msra.mxu0 %v951
    %1130 = vmatprep.subr.bf16.mxu0 0
    %1131 = vmatpush2.bf16.msra.mxu0 %v950
    %1132 = vmatprep.subr.bf16.mxu0 0
    %1133 = vmatpush2.bf16.msra.mxu0 %v949
    %1134 = vmatprep.subr.bf16.mxu0 0
    %1135 = vmatpush2.bf16.msra.mxu0 %v948
    %1136 = vmatprep.subr.bf16.mxu0 0
    %1137 = vmatpush2.bf16.msra.mxu0 %v947
    %1138 = vmatprep.subr.bf16.mxu0 0
    %1139 = vmatpush2.bf16.msra.mxu0 %v946
    %1140 = vmatprep.subr.bf16.mxu0 0
    %1141 = vmatpush2.bf16.msra.mxu0 %v945
    %1142 = vmatprep.subr.bf16.mxu0 0
    %1143 = vmatpush2.bf16.msra.mxu0 %v944
    %1144 = vmatprep.mubr.bf16.mxu0 %v635
    %1145 = vmatmul.mubr.bf16.gmra.mxu0 %v621
    %v1146 = vpop.f32.mrf.mxu0
    %v1147 = vadd.f32 %v1107, %v1146
    %v1148 = vpop.f32.mrf.mxu0
    %v1149 = vpop.f32.mrf.mxu0
    %v1150 = vpop.f32.mrf.mxu0
    %1151 = vdwg.mxu0
    %1152 = vmatprep.subr.bf16.mxu0 0
    %1153 = vmatpush1.bf16.msra.mxu0 %v959
    %1154 = vmatprep.subr.bf16.mxu0 0
    %1155 = vmatpush1.bf16.msra.mxu0 %v958
    %1156 = vmatprep.subr.bf16.mxu0 0
    %1157 = vmatpush1.bf16.msra.mxu0 %v957
    %1158 = vmatprep.subr.bf16.mxu0 0
    %1159 = vmatpush1.bf16.msra.mxu0 %v956
    %1160 = vmatprep.subr.bf16.mxu0 0
    %1161 = vmatpush1.bf16.msra.mxu0 %v955
    %1162 = vmatprep.subr.bf16.mxu0 0
    %1163 = vmatpush1.bf16.msra.mxu0 %v954
    %1164 = vmatprep.subr.bf16.mxu0 0
    %1165 = vmatpush1.bf16.msra.mxu0 %v953
    %1166 = vmatprep.subr.bf16.mxu0 0
    %1167 = vmatpush1.bf16.msra.mxu0 %v952
    %1168 = vmatprep.subr.bf16.mxu0 0
    %1169 = vmatpush2.bf16.msra.mxu0 %v967
    %1170 = vmatprep.subr.bf16.mxu0 0
    %1171 = vmatpush2.bf16.msra.mxu0 %v966
    %1172 = vmatprep.subr.bf16.mxu0 0
    %1173 = vmatpush2.bf16.msra.mxu0 %v965
    %1174 = vmatprep.subr.bf16.mxu0 0
    %1175 = vmatpush2.bf16.msra.mxu0 %v964
    %1176 = vmatprep.subr.bf16.mxu0 0
    %1177 = vmatpush2.bf16.msra.mxu0 %v963
    %1178 = vmatprep.subr.bf16.mxu0 0
    %1179 = vmatpush2.bf16.msra.mxu0 %v962
    %1180 = vmatprep.subr.bf16.mxu0 0
    %1181 = vmatpush2.bf16.msra.mxu0 %v961
    %1182 = vmatprep.subr.bf16.mxu0 0
    %1183 = vmatpush2.bf16.msra.mxu0 %v960
    %1184 = vmatprep.mubr.bf16.mxu0 %v639
    %1185 = vmatmul.mubr.bf16.gmra.mxu0 %v637
    %v1186 = vpop.f32.mrf.mxu0
    %v1187 = vadd.f32 %v1147, %v1186
    %v1188 = vpop.f32.mrf.mxu0
    %v1189 = vpop.f32.mrf.mxu0
    %v1190 = vpop.f32.mrf.mxu0
    %1191 = vdwg.mxu0
    %v1192 = vadd.f32 %v460, %v1187
    %1193 = vst [vmem:[#allocation10] sm:$0x3] %v1192
    // Predicated region
    $region46: #{tpu_custom_call.1} parent=1 // pred_check
      _
    $region47: #{tpu_custom_call.1} parent=1 // pred_check_branch
      %1195 = sbr.rel (0) target = $region49
    $region48: #{tpu_custom_call.1} parent=1 // pred_region
      %s1197 = ssub.s32 32, 32
      %1198 = vsyncadd [#allocation4], %s1197
      %s1200 = sshll.u32 [#allocation10], 4
      %s1201 = int_to_ptr.vmem [resolvable:$true] %s1200
      %1203 = dma.vmem_to_hbm [thread:$0]  %s1201, 32, %s7, [#allocation4]
    $region49: #{tpu_custom_call.1} parent=1 // pred_fallthru
      _
    // Predicated region
    $region50: #{tpu_custom_call.1} parent=1 // pred_check
      _
    $region51: #{tpu_custom_call.1} parent=1 // pred_check_branch
      %1205 = sbr.rel (0) target = $region53
    $region52: #{tpu_custom_call.1} parent=1 // pred_region
      %1206 = dma.done [#allocation4], 32
    $region53: #{tpu_custom_call.1} parent=1 // pred_fallthru
      _
    %1207 = vsyncpa [#allocation3], 1
    %1208 = vsyncpa [#allocation6], 1
    %1209 = vsyncpa [#allocation9], 1
    %1210 = vsyncpa [#allocation4], 1

</llo_original>
